<compile_context>
chip_gen: v7x
topology: tpu7x:2x2x1
jax: 0.10.0
libtpu: 0.0.40
codegen_flags: <defaults>
</compile_context>

<pallas_src>
import functools

import jax
import jax.numpy as jnp
from jax.experimental import pallas as pl
from jax.experimental.pallas import tpu as pltpu

_LANE = 128      # packed x rows are this many lanes wide
_SUBLANE = 8     # row tiles must be a multiple of this (unless == full dim)
_MAX_TM = 1024   # max packed-row tile size (raised from 512 per review)


def _round_up(x, m):
    return ((x + m - 1) // m) * m


def _linear_kernel(x_ref, w_ref, b_ref, o_ref):
    # (tm, Kp) packed-row tile @ VMEM-resident block-diagonal (Kp, Np) weight:
    # f32-accumulating MXU matmul, VPU bias add, lane-dense unmasked store.
    acc = jnp.dot(x_ref[...], w_ref[...], preferred_element_type=jnp.float32)
    o_ref[...] = (acc + b_ref[...]).astype(o_ref.dtype)


def _choose_tile(mp):
    """Pick (tm, mp_pad) for `mp` packed rows."""
    if mp <= _SUBLANE:
        # Single tile equal to the full packed array -> (8,128) rule waived,
        # no M padding at all for the small-batch case.
        return mp, mp
    # Always >= 2 tiles so ("parallel",) can use both TensorCores on v7x;
    # balance tile sizes so worst-case row padding stays < one sublane group.
    n_tiles = max(2, -(-mp // _MAX_TM))
    tm = _round_up(-(-mp // n_tiles), _SUBLANE)
    return tm, _round_up(mp, tm)


@functools.partial(jax.jit, static_argnames=("pack", "n_out"))
def _packed_linear(x, w_blk, b_blk, *, pack, n_out):
    """x: (M, K) f32, w_blk: (K*pack, n_out*pack) block-diag, b_blk: (1, n_out*pack)."""
    M, K = x.shape
    Kp, Np = w_blk.shape
    assert Kp == K * pack and Np == n_out * pack and b_blk.shape == (1, Np)

    mp = -(-M // pack)                      # packed rows needed
    tm, mp_pad = _choose_tile(mp)
    m_pad = mp_pad * pack
    if m_pad != M:                          # inside jit -> fuses with neighbours
        x = jnp.pad(x, ((0, m_pad - M), (0, 0)))
    xp = x.reshape(mp_pad, Kp)              # free row-major re-view: pack rows -> 1 lane-dense row
    grid_m = mp_pad // tm

    # Generation-safe VMEM guard (double-buffered x/out tiles + resident w/b).
    vmem_bytes = 4 * (2 * tm * (Kp + Np) + 2 * (Kp * Np + Np))
    assert vmem_bytes < 12 * 1024 * 1024, vmem_bytes

    out = pl.pallas_call(
        _linear_kernel,
        out_shape=jax.ShapeDtypeStruct((mp_pad, Np), x.dtype),
        grid=(grid_m,),
        in_specs=[
            pl.BlockSpec((tm, Kp), lambda i: (i, 0)),   # stream packed x row-tiles
            pl.BlockSpec((Kp, Np), lambda i: (0, 0)),   # weight: constant block, copied once
            pl.BlockSpec((1, Np), lambda i: (0, 0)),    # bias:   constant block, copied once
        ],
        out_specs=pl.BlockSpec((tm, Np), lambda i: (i, 0)),
        compiler_params=pltpu.CompilerParams(
            dimension_semantics=("parallel",),          # shard row tiles across TCs on v7x
        ),
        cost_estimate=pl.CostEstimate(
            flops=2 * mp_pad * Kp * Np,
            transcendentals=0,
            bytes_accessed=4 * (mp_pad * Kp + Kp * Np + Np + mp_pad * Np),
        ),
    )(xp, w_blk, b_blk)

    # Un-pack: (mp_pad, pack*n_out) -> (m_pad, n_out) is a free row-major
    # reshape; [:M] only drops M-padding rows (identity when M is aligned).
    return out.reshape(m_pad, n_out)[:M]


class PallasLinear:
    """Inner module: y = x @ W + b, deterministic init, matmul in Pallas."""

    def __init__(self, in_features, out_features, key):
        kw, kb = jax.random.split(key)
        scale = 1.0 / jnp.sqrt(jnp.float32(in_features))
        self.in_features = in_features
        self.out_features = out_features
        self.weight = jax.random.uniform(
            kw, (in_features, out_features), jnp.float32, -scale, scale)
        self.bias = jax.random.uniform(
            kb, (out_features,), jnp.float32, -scale, scale)
        # Lane-packing factor: pack `pack` consecutive input rows into one
        # 128-wide row (pack=4 for hidden=32); falls back to 1 otherwise.
        self.pack = (_LANE // in_features
                     if (_LANE % in_features == 0 and in_features < _LANE) else 1)
        # Block-diagonal weight (K*pack, N*pack) + tiled bias, built once at init.
        self.w_blk = jnp.kron(jnp.eye(self.pack, dtype=jnp.float32), self.weight)
        self.b_blk = jnp.tile(self.bias, self.pack).reshape(1, self.pack * out_features)

    def __call__(self, x):
        lead = x.shape[:-1]
        x2 = x.reshape(-1, self.in_features)
        y = _packed_linear(x2, self.w_blk, self.b_blk,
                           pack=self.pack, n_out=self.out_features)
        return y.reshape(*lead, self.out_features)


class MemorizeShapeModule:
    """JAX/Pallas analogue of the PyTorch MemorizeShapeModule wrapper.

    Records the shape of every input it sees, then delegates to the wrapped
    callable (here: the Pallas linear layer).
    """

    def __init__(self, module):
        self.module = module
        self.shapes = []

    def __call__(self, x):
        # Host-side Python side effect, recorded once per call: the jit lives
        # inside the wrapped module, so this line always runs eagerly.
        self.shapes.append(tuple(x.shape))
        return self.module(x)


if __name__ == "__main__":
    key = jax.random.PRNGKey(0)
    k_x, k_p = jax.random.split(key)

    batch, seq, hidden, out_dim = 2, 8, 32, 64
    inner = PallasLinear(hidden, out_dim, k_p)
    mod = MemorizeShapeModule(inner)

    # 2-D call: (16, 32) -> (16, 64)
    x = jax.random.normal(k_x, (batch * seq, hidden), jnp.float32)
    y = jax.block_until_ready(mod(x))
    y_ref = x @ inner.weight + inner.bias
    assert y.shape == (batch * seq, out_dim)
    assert jnp.allclose(y, y_ref, atol=1e-5, rtol=1e-5)

    # 3-D call through the same wrapper (exercises leading-dim reshape and the
    # per-call shape memorization; flattened shape hits the jit cache).
    x3 = x.reshape(batch, seq, hidden)
    y3 = jax.block_until_ready(mod(x3))
    assert y3.shape == (batch, seq, out_dim)
    assert jnp.allclose(y3.reshape(-1, out_dim), y_ref, atol=1e-5, rtol=1e-5)

    assert mod.shapes == [(batch * seq, hidden), (batch, seq, hidden)]
    print("KERNEL_OK")
</pallas_src>

<mosaic_0001>
module attributes {stable_mosaic.version = 11 : i64} {
  func.func @_linear_kernel(%arg0: i32, %arg1: memref<4x128xf32, #tpu.memory_space<vmem>>, %arg2: memref<128x256xf32, #tpu.memory_space<vmem>>, %arg3: memref<1x256xf32, #tpu.memory_space<vmem>>, %arg4: memref<4x256xf32, #tpu.memory_space<vmem>>) attributes {dimension_semantics = [#tpu.dimension_semantics<parallel>], iteration_bounds = array<i64: 1>, scalar_prefetch = 0 : i64, scratch_operands = 0 : i64, tpu.core_type = #tpu.core_type<tc>, window_params = [{transform_indices = @transform_0, window_bounds = array<i64: 4, 128>}, {pipeline_mode = #tpu.pipeline_mode<synchronous>, transform_indices = @transform_1, window_bounds = array<i64: 128, 256>}, {pipeline_mode = #tpu.pipeline_mode<synchronous>, transform_indices = @transform_2, window_bounds = array<i64: 1, 256>}, {transform_indices = @transform_3, window_bounds = array<i64: 4, 256>}]} {
    %c0 = arith.constant 0 : index
    %c0_0 = arith.constant 0 : index
    %0 = vector.load %arg1[%c0, %c0_0] : memref<4x128xf32, #tpu.memory_space<vmem>>, vector<4x128xf32>
    %c0_1 = arith.constant 0 : index
    %c0_2 = arith.constant 0 : index
    %1 = vector.load %arg2[%c0_1, %c0_2] : memref<128x256xf32, #tpu.memory_space<vmem>>, vector<128x256xf32>
    %cst = arith.constant dense<0.000000e+00> : vector<4x256xf32>
    %2 = tpu.matmul %0, %1, %cst {dimension_numbers = #tpu.dot_dimension_numbers<[1], [0], [0], [1], [0, 0, 1, 1], [], []>} : vector<4x128xf32>, vector<128x256xf32>, vector<4x256xf32> -> vector<4x256xf32>
    %c0_3 = arith.constant 0 : index
    %c0_4 = arith.constant 0 : index
    %3 = vector.load %arg3[%c0_3, %c0_4] : memref<1x256xf32, #tpu.memory_space<vmem>>, vector<1x256xf32>
    %4 = vector.broadcast %3 : vector<1x256xf32> to vector<4x256xf32>
    %5 = arith.addf %2, %4 : vector<4x256xf32>
    %c0_5 = arith.constant 0 : index
    %c0_6 = arith.constant 0 : index
    %6 = vector.load %arg4[%c0_5, %c0_6] : memref<4x256xf32, #tpu.memory_space<vmem>>, vector<4x256xf32>
    tpu.vector_store %arg4[%c0_5, %c0_6], %5 {strides = array<i32>} : memref<4x256xf32, #tpu.memory_space<vmem>>, vector<4x256xf32>,
    return
  }
  func.func @transform_0(%arg0: i32) -> (i32, i32) {
    %c0_i32 = arith.constant 0 : i32
    %c0_i32_0 = arith.constant 0 : i32
    return %arg0, %c0_i32 : i32, i32
  }
  func.func @transform_1(%arg0: i32) -> (i32, i32) {
    %c0_i32 = arith.constant 0 : i32
    %c0_i32_0 = arith.constant 0 : i32
    %c0_i32_1 = arith.constant 0 : i32
    return %c0_i32, %c0_i32_0 : i32, i32
  }
  func.func @transform_2(%arg0: i32) -> (i32, i32) {
    %c0_i32 = arith.constant 0 : i32
    %c0_i32_0 = arith.constant 0 : i32
    %c0_i32_1 = arith.constant 0 : i32
    return %c0_i32, %c0_i32_0 : i32, i32
  }
  func.func @transform_3(%arg0: i32) -> (i32, i32) {
    %c0_i32 = arith.constant 0 : i32
    %c0_i32_0 = arith.constant 0 : i32
    return %arg0, %c0_i32 : i32, i32
  }
}

</mosaic_0001>

<llo_original>
// kernel: _packed_linear.1
$region0: #{_packed_linear.1}
  #allocation0 [shape = 'u32[]', space=smem, size = 0x4, offset = 0x4, fixed_abs, tag = 'smem constant byte address 0x4 - core index']
  #allocation1 [shape = 'u32[144,128]{1,0:T(1,128)}', space=vmem, size = 0x12000, scoped, tag = 'internal scratch']
  %s0 = inlined_call_operand.vmem [shape: f32[4,128], index: 0, kind: input, shape index: {}]
  %s1 = inlined_call_operand.hbm [shape: f32[128,256], index: 1, kind: input, shape index: {}]
  %s2 = inlined_call_operand.vmem [shape: f32[1,256], index: 2, kind: input, shape index: {}]
  %s3 = inlined_call_operand.vmem [shape: f32[4,256], index: 3, kind: output, shape index: {}]
  %s4 = sld [smem:[#allocation0]]
  $region26: #{_packed_linear.1} parent=0
    _
  %s6 = ssub.s32 1, %s4
  %s7 = scalar_select 0, %s6, %s4
  $region1: #{_packed_linear.1} parent=0
    #allocation2 [shape = 'u8[131072]{0}', space=vmem, size = 0x20000, scoped, tag = 'input window, operand 1, single buffered']
    #allocation3 [shape = 's32[1]{0}', space=sflag, size = 0x4, scoped, tag = 'scoped memory for _packed_linear.1']
    %8 = vsyncpa [#allocation3], 0
    // Predicated region
    $region2: #{_packed_linear.1} parent=1 // pred_check
      _
    $region3: #{_packed_linear.1} parent=1 // pred_check_branch
      %10 = sbr.rel (0) target = $region5
    $region4: #{_packed_linear.1} parent=1 // pred_region
      _
    $region5: #{_packed_linear.1} parent=1 // pred_fallthru
      _
    // Predicated region
    $region6: #{_packed_linear.1} parent=1 // pred_check
      _
    $region7: #{_packed_linear.1} parent=1 // pred_check_branch
      %12 = sbr.rel (0) target = $region9
    $region8: #{_packed_linear.1} parent=1 // pred_region
      %s14 = ssub.s32 4096, 4096
      %15 = vsyncadd [#allocation3], %s14
      %s16 = sshll.u32 [#allocation2], 4
      %s17 = int_to_ptr.vmem [resolvable:$true] %s16
      %22 = dma.hbm_to_vmem [thread:$0]  %s1, 4096, %s17, [#allocation3], 256, 256, 16
    $region9: #{_packed_linear.1} parent=1 // pred_fallthru
      _
    // Predicated region
    $region10: #{_packed_linear.1} parent=1 // pred_check
      _
    $region11: #{_packed_linear.1} parent=1 // pred_check_branch
      %24 = sbr.rel (0) target = $region13
    $region12: #{_packed_linear.1} parent=1 // pred_region
      _
    $region13: #{_packed_linear.1} parent=1 // pred_fallthru
      _
    // Predicated region
    $region14: #{_packed_linear.1} parent=1 // pred_check
      _
    $region15: #{_packed_linear.1} parent=1 // pred_check_branch
      %26 = sbr.rel (0) target = $region17
    $region16: #{_packed_linear.1} parent=1 // pred_region
      %27 = dma.done [#allocation3], 4096
    $region17: #{_packed_linear.1} parent=1 // pred_fallthru
      _
    %v28 = vld [vmem:[%s0] sm:$0xf]
    %v29 = vld [vmem:[#allocation2] sm:$0xff]
    %v30 = vld [vmem:[#allocation2 + $0x8] sm:$0xff]
    %v31 = vld [vmem:[#allocation2 + $0x10] sm:$0xff]
    %v32 = vld [vmem:[#allocation2 + $0x18] sm:$0xff]
    %v33 = vld [vmem:[#allocation2 + $0x20] sm:$0xff]
    %v34 = vld [vmem:[#allocation2 + $0x28] sm:$0xff]
    %v35 = vld [vmem:[#allocation2 + $0x30] sm:$0xff]
    %v36 = vld [vmem:[#allocation2 + $0x38] sm:$0xff]
    %v37 = vld [vmem:[#allocation2 + $0x40] sm:$0xff]
    %v38 = vld [vmem:[#allocation2 + $0x48] sm:$0xff]
    %v39 = vld [vmem:[#allocation2 + $0x50] sm:$0xff]
    %v40 = vld [vmem:[#allocation2 + $0x58] sm:$0xff]
    %v41 = vld [vmem:[#allocation2 + $0x60] sm:$0xff]
    %v42 = vld [vmem:[#allocation2 + $0x68] sm:$0xff]
    %v43 = vld [vmem:[#allocation2 + $0x70] sm:$0xff]
    %v44 = vld [vmem:[#allocation2 + $0x78] sm:$0xff]
    %v45 = vld [vmem:[#allocation2 + $0x80] sm:$0xff]
    %v46 = vld [vmem:[#allocation2 + $0x88] sm:$0xff]
    %v47 = vld [vmem:[#allocation2 + $0x90] sm:$0xff]
    %v48 = vld [vmem:[#allocation2 + $0x98] sm:$0xff]
    %v49 = vld [vmem:[#allocation2 + $0xa0] sm:$0xff]
    %v50 = vld [vmem:[#allocation2 + $0xa8] sm:$0xff]
    %v51 = vld [vmem:[#allocation2 + $0xb0] sm:$0xff]
    %v52 = vld [vmem:[#allocation2 + $0xb8] sm:$0xff]
    %v53 = vld [vmem:[#allocation2 + $0xc0] sm:$0xff]
    %v54 = vld [vmem:[#allocation2 + $0xc8] sm:$0xff]
    %v55 = vld [vmem:[#allocation2 + $0xd0] sm:$0xff]
    %v56 = vld [vmem:[#allocation2 + $0xd8] sm:$0xff]
    %v57 = vld [vmem:[#allocation2 + $0xe0] sm:$0xff]
    %v58 = vld [vmem:[#allocation2 + $0xe8] sm:$0xff]
    %v59 = vld [vmem:[#allocation2 + $0xf0] sm:$0xff]
    %v60 = vld [vmem:[#allocation2 + $0xf8] sm:$0xff]
    %v61 = vld [vmem:[%s2] sm:$0x3]
    %v63 = vlaneseq
    %v64 = vshrl.u32 %v63, 7
    %v65 = vsub.s32 0, %v64
    %v66 = vrot.slane %v61, %v65
    %v67 = vlaneseq
    %v68 = vshrl.u32 %v67, 7
    %v69 = vsub.s32 1, %v68
    %v70 = vrot.slane %v61, %v69
    %73 = vmatprep.subr.mxu0 %v30
    %74 = vmatpush1.msra.mxu0 %v29
    %75 = vmatprep.subr.mxu0 %v32
    %76 = vmatpush1.msra.mxu0 %v31
    %77 = vmatprep.subr.mxu0 %v34
    %78 = vmatpush1.msra.mxu0 %v33
    %79 = vmatprep.subr.mxu0 %v36
    %80 = vmatpush1.msra.mxu0 %v35
    %81 = vmatprep.subr.mxu0 %v38
    %82 = vmatpush1.msra.mxu0 %v37
    %83 = vmatprep.subr.mxu0 %v40
    %84 = vmatpush1.msra.mxu0 %v39
    %85 = vmatprep.subr.mxu0 %v42
    %86 = vmatpush1.msra.mxu0 %v41
    %87 = vmatprep.subr.mxu0 %v44
    %88 = vmatpush1.msra.mxu0 %v43
    %89 = vmatprep.subr.mxu0 %v46
    %90 = vmatpush1.msra.mxu0 %v45
    %91 = vmatprep.subr.mxu0 %v48
    %92 = vmatpush1.msra.mxu0 %v47
    %93 = vmatprep.subr.mxu0 %v50
    %94 = vmatpush1.msra.mxu0 %v49
    %95 = vmatprep.subr.mxu0 %v52
    %96 = vmatpush1.msra.mxu0 %v51
    %97 = vmatprep.subr.mxu0 %v54
    %98 = vmatpush1.msra.mxu0 %v53
    %99 = vmatprep.subr.mxu0 %v56
    %100 = vmatpush1.msra.mxu0 %v55
    %101 = vmatprep.subr.mxu0 %v58
    %102 = vmatpush1.msra.mxu0 %v57
    %103 = vmatprep.subr.mxu0 %v60
    %104 = vmatpush1.msra.mxu0 %v59
    %105 = vmatprep.subr.mxu0 0.0
    %106 = vmatpush1.msra.mxu0 0.0
    %107 = vmatprep.subr.mxu0 0.0
    %108 = vmatpush1.msra.mxu0 0.0
    %109 = vmatprep.subr.mxu0 0.0
    %110 = vmatpush1.msra.mxu0 0.0
    %111 = vmatprep.subr.mxu0 0.0
    %112 = vmatpush1.msra.mxu0 0.0
    %113 = vmatprep.subr.mxu0 0.0
    %114 = vmatpush1.msra.mxu0 0.0
    %115 = vmatprep.subr.mxu0 0.0
    %116 = vmatpush1.msra.mxu0 0.0
    %117 = vmatprep.subr.mxu0 0.0
    %118 = vmatpush1.msra.mxu0 0.0
    %119 = vmatprep.subr.mxu0 0.0
    %120 = vmatpush1.msra.mxu0 0.0
    %121 = vmatprep.subr.mxu0 0.0
    %122 = vmatpush1.msra.mxu0 0.0
    %123 = vmatprep.subr.mxu0 0.0
    %124 = vmatpush1.msra.mxu0 0.0
    %125 = vmatprep.subr.mxu0 0.0
    %126 = vmatpush1.msra.mxu0 0.0
    %127 = vmatprep.subr.mxu0 0.0
    %128 = vmatpush1.msra.mxu0 0.0
    %129 = vmatprep.subr.mxu0 0.0
    %130 = vmatpush1.msra.mxu0 0.0
    %131 = vmatprep.subr.mxu0 0.0
    %132 = vmatpush1.msra.mxu0 0.0
    %133 = vmatprep.subr.mxu0 0.0
    %134 = vmatpush1.msra.mxu0 0.0
    %135 = vmatprep.subr.mxu0 0.0
    %136 = vmatpush1.msra.mxu0 0.0
    %137 = vmatprep.mubr.f32.mxu0 0.0
    %138 = vmatmul.mubr.f32.gmra.mrb[0].mxu0 %v28
    %v139 = vpop.f32.mrb[0].mxu0
    %v140 = vadd.f32 %v66, %v139
    %v141 = vpop.f32.mrb[0].mxu0
    %v142 = vadd.f32 %v70, %v141
    %143 = vdwg.mxu0
    %v146 = vcombine.low %v140, %v142
    %148 = vst [vmem:[%s3] sm:$0xff] %v146
    // Predicated region
    $region18: #{_packed_linear.1} parent=1 // pred_check
      _
    $region19: #{_packed_linear.1} parent=1 // pred_check_branch
      %150 = sbr.rel (0) target = $region21
    $region20: #{_packed_linear.1} parent=1 // pred_region
      _
    $region21: #{_packed_linear.1} parent=1 // pred_fallthru
      _
    // Predicated region
    $region22: #{_packed_linear.1} parent=1 // pred_check
      _
    $region23: #{_packed_linear.1} parent=1 // pred_check_branch
      %152 = sbr.rel (0) target = $region25
    $region24: #{_packed_linear.1} parent=1 // pred_region
      _
    $region25: #{_packed_linear.1} parent=1 // pred_fallthru
      _
    %153 = vsyncpa [#allocation3], 1

</llo_original>
